<compile_context>
chip_gen: v7x
topology: tpu7x:2x2x1
jax: 0.10.0
libtpu: 0.0.40
codegen_flags: <defaults>
</compile_context>

<pallas_src>
import math
import functools

import jax
import jax.numpy as jnp
from jax import lax
from jax.experimental import pallas as pl
from jax.experimental.pallas import tpu as pltpu


def get_p4weight(w):
    # w: (O, Cin, K, K) -> (4*O, Cin, K, K); expanded out-channel index = o*4 + r
    # (matches torch: cat([rot90(w,k,(-2,-1)) for k in range(4)],1).view(-1,Cin,K,K))
    ws = [jnp.rot90(w, k, axes=(-2, -1)) for k in range(4)]
    return jnp.stack(ws, axis=1).reshape(-1, w.shape[1], w.shape[2], w.shape[3])


def get_p8weight(w):
    w_p4 = get_p4weight(w)
    return jnp.concatenate(
        [w_p4, jnp.flip(w_p4, axis=-1)], axis=1
    ).reshape(-1, w.shape[1], w.shape[2], w.shape[3])


def _round_up(x, m):
    return (x + m - 1) // m * m


def _gemm_bias_kernel(lhs_ref, rhs_ref, b_ref, o_ref, acc_ref):
    # lhs_ref: (1, TM, TK) bf16   im2col rows x contraction tile
    # rhs_ref: (TK, TN)    bf16   contraction tile x expanded-channel tile
    # b_ref:   (1, TN)     f32    bias (already repeated x4, zero-padded)
    # o_ref:   (1, TM, TN) f32
    # acc_ref: (TM, TN)    f32    VMEM accumulator, resident across k
    k = pl.program_id(3)

    @pl.when(k == 0)
    def _():
        acc_ref[...] = jnp.zeros_like(acc_ref)

    acc_ref[...] += jnp.dot(lhs_ref[0], rhs_ref[...],
                            preferred_element_type=jnp.float32)

    @pl.when(k == pl.num_programs(3) - 1)
    def _():
        o_ref[0] = (acc_ref[...] + b_ref[...]).astype(o_ref.dtype)


def conv2d_z2p4_forward(x, weight, bias=None, *, compute_dtype=jnp.bfloat16):
    """Forward of Conv2dZ2P4 (g_type='p4', stride=1, padding=0).

    x:      (N, Cin, H, W)   NCHW, like PyTorch
    weight: (O, Cin, K, K)
    bias:   (O,) or None
    returns (N, O, 4, H-K+1, W-K+1)  float32
    """
    # TODO(synk): only the g_type='p4' path is wired; 'p4m' (get_p8weight) would
    # just swap the weight-expansion glue, the GEMM kernel is identical.
    N, Cin, H, W = x.shape
    O, _, K, _ = weight.shape
    Hout, Wout = H - K + 1, W - K + 1
    P = Hout * Wout            # valid output positions only
    Cexp = 4 * O               # expanded output channels (o*4 + rotation)
    Kc = K * K * Cin           # fused contraction dim (tap-major, cin-minor)

    # --- glue: P4-expanded weight as one (Kc, Cexp) GEMM operand ---
    w_exp = get_p4weight(weight)                                   # (4O, Cin, K, K)
    rhs = jnp.transpose(w_exp, (2, 3, 1, 0)).reshape(Kc, Cexp)     # [(dy*K+dx)*Cin+c, cexp]

    # --- glue: im2col LHS over valid positions only ---
    x_nhwc = jnp.transpose(x, (0, 2, 3, 1))                        # (N, H, W, Cin)
    patches = [x_nhwc[:, dy:dy + Hout, dx:dx + Wout, :]
               for dy in range(K) for dx in range(K)]
    lhs = jnp.concatenate(patches, axis=-1).reshape(N, P, Kc)      # (N, P, Kc)

    # --- tiling: lane-dense (multiples of 128) contraction & channel dims ---
    TN = min(_round_up(Cexp, 128), 256)
    TK = min(_round_up(Kc, 128), 512)
    if P >= 1024:
        TM = 512
    elif P >= 128:
        TM = 128
    else:
        TM = _round_up(P, 8)
    Kc_pad = _round_up(Kc, TK)
    Cexp_pad = _round_up(Cexp, TN)
    P_pad = _round_up(P, TM)

    lhs = jnp.pad(lhs, ((0, 0), (0, P_pad - P), (0, Kc_pad - Kc))).astype(compute_dtype)
    rhs = jnp.pad(rhs, ((0, Kc_pad - Kc), (0, Cexp_pad - Cexp))).astype(compute_dtype)

    if bias is None:
        bias_exp = jnp.zeros((1, Cexp_pad), jnp.float32)
    else:
        # PyTorch adds bias.view(1, O, 1, 1, 1) after the (N, O, 4, ...) view:
        # each output channel's bias is shared across the 4 rotations.
        bias_exp = jnp.repeat(bias.astype(jnp.float32), 4).reshape(1, Cexp)
        bias_exp = jnp.pad(bias_exp, ((0, 0), (0, Cexp_pad - Cexp)))

    grid = (N, P_pad // TM, Cexp_pad // TN, Kc_pad // TK)

    flops = 2 * N * P_pad * Kc_pad * Cexp_pad
    bytes_accessed = (lhs.size * lhs.dtype.itemsize
                      + rhs.size * rhs.dtype.itemsize
                      + bias_exp.size * 4
                      + N * P_pad * Cexp_pad * 4)

    out = pl.pallas_call(
        _gemm_bias_kernel,
        out_shape=jax.ShapeDtypeStruct((N, P_pad, Cexp_pad), jnp.float32),
        grid_spec=pltpu.PrefetchScalarGridSpec(
            num_scalar_prefetch=0,
            grid=grid,
            in_specs=[
                pl.BlockSpec((1, TM, TK), lambda n, m, j, k: (n, m, k)),
                pl.BlockSpec((TK, TN), lambda n, m, j, k: (k, j)),
                pl.BlockSpec((1, TN), lambda n, m, j, k: (0, j)),
            ],
            out_specs=pl.BlockSpec((1, TM, TN), lambda n, m, j, k: (n, m, j)),
            scratch_shapes=[pltpu.VMEM((TM, TN), jnp.float32)],
        ),
        compiler_params=pltpu.CompilerParams(
            dimension_semantics=("parallel", "parallel", "parallel", "arbitrary")),
        cost_estimate=pl.CostEstimate(flops=flops, transcendentals=0,
                                      bytes_accessed=bytes_accessed),
    )(lhs, rhs, bias_exp)

    # --- glue: crop padding and reshape to (N, O, 4, H', W') ---
    y = out[:, :P, :Cexp].reshape(N, Hout, Wout, O, 4)
    y = jnp.transpose(y, (0, 3, 4, 1, 2))
    return y


if __name__ == "__main__":
    # Small shapes consistent with the module: N=2, Cin=4, 16x16, O=8, K=3.
    N, Cin, H, W = 2, 4, 16, 16
    O, K = 8, 3

    key = jax.random.PRNGKey(0)
    kw, kb, kx = jax.random.split(key, 3)

    # Deterministic init mirroring kaiming_uniform_(a=sqrt(5)):
    # bound = gain*sqrt(3/fan_in) with gain=sqrt(2/(1+5)) -> bound = 1/sqrt(fan_in)
    fan_in = Cin * K * K
    bound = 1.0 / math.sqrt(fan_in)
    weight = jax.random.uniform(kw, (O, Cin, K, K), jnp.float32, -bound, bound)
    bias = jax.random.uniform(kb, (O,), jnp.float32, -bound, bound)
    x = jax.random.normal(kx, (N, Cin, H, W), jnp.float32)

    y = conv2d_z2p4_forward(x, weight, bias)
    jax.block_until_ready(y)

    # Reference: XLA conv with the same bf16-operand / f32-accumulate math
    # (the kernel deliberately uses bf16 MXU inputs for throughput).
    w_exp = get_p4weight(weight)
    ref = lax.conv_general_dilated(
        x.astype(jnp.bfloat16), w_exp.astype(jnp.bfloat16),
        window_strides=(1, 1), padding="VALID",
        dimension_numbers=("NCHW", "OIHW", "NCHW"),
        preferred_element_type=jnp.float32)
    ref = ref.reshape(N, O, 4, H - K + 1, W - K + 1) + bias.reshape(1, O, 1, 1, 1)

    assert y.shape == (N, O, 4, H - K + 1, W - K + 1), y.shape
    err = float(jnp.max(jnp.abs(y - ref)))
    assert jnp.allclose(y, ref, atol=1e-3, rtol=1e-3), err
    print("KERNEL_OK")
</pallas_src>

<mosaic_0001>
module attributes {stable_mosaic.version = 11 : i64} {
  func.func @_gemm_bias_kernel(%arg0: i32, %arg1: i32, %arg2: i32, %arg3: i32, %arg4: memref<1x128x128xbf16, #tpu.memory_space<vmem>>, %arg5: memref<128x128xbf16, #tpu.memory_space<vmem>>, %arg6: memref<1x128xf32, #tpu.memory_space<vmem>>, %arg7: memref<1x128x128xf32, #tpu.memory_space<vmem>>, %arg8: memref<128x128xf32, #tpu.memory_space<vmem>>) attributes {dimension_semantics = [#tpu.dimension_semantics<parallel>, #tpu.dimension_semantics<parallel>, #tpu.dimension_semantics<parallel>, #tpu.dimension_semantics<arbitrary>], iteration_bounds = array<i64: 2, 2, 1, 1>, scalar_prefetch = 0 : i64, scratch_operands = 1 : i64, tpu.core_type = #tpu.core_type<tc>, window_params = [{transform_indices = @transform_0, window_bounds = array<i64: 1, 128, 128>}, {transform_indices = @transform_1, window_bounds = array<i64: 128, 128>}, {transform_indices = @transform_2, window_bounds = array<i64: 1, 128>}, {transform_indices = @transform_3, window_bounds = array<i64: 1, 128, 128>}]} {
    %c0_i32 = arith.constant 0 : i32
    %0 = arith.cmpi eq, %arg3, %c0_i32 : i32
    %1 = arith.extui %0 : i1 to i32
    %c0_i32_0 = arith.constant 0 : i32
    %2 = arith.cmpi ne, %1, %c0_i32_0 : i32
    scf.if %2 {
      %cst_11 = arith.constant 0.000000e+00 : f32
      %13 = vector.broadcast %cst_11 : f32 to vector<128x128xf32>
      %c0_12 = arith.constant 0 : index
      %c0_13 = arith.constant 0 : index
      %14 = vector.load %arg8[%c0_12, %c0_13] : memref<128x128xf32, #tpu.memory_space<vmem>>, vector<128x128xf32>
      tpu.vector_store %arg8[%c0_12, %c0_13], %13 {strides = array<i32>} : memref<128x128xf32, #tpu.memory_space<vmem>>, vector<128x128xf32>,
    } else {
    }
    %c0 = arith.constant 0 : index
    %c0_1 = arith.constant 0 : index
    %3 = vector.load %arg8[%c0, %c0_1] : memref<128x128xf32, #tpu.memory_space<vmem>>, vector<128x128xf32>
    %c0_2 = arith.constant 0 : index
    %c0_3 = arith.constant 0 : index
    %c0_4 = arith.constant 0 : index
    %4 = vector.load %arg4[%c0_2, %c0_3, %c0_4] : memref<1x128x128xbf16, #tpu.memory_space<vmem>>, vector<1x128x128xbf16>
    %5 = vector.shape_cast %4 : vector<1x128x128xbf16> to vector<128x128xbf16>
    %c0_5 = arith.constant 0 : index
    %c0_6 = arith.constant 0 : index
    %6 = vector.load %arg5[%c0_5, %c0_6] : memref<128x128xbf16, #tpu.memory_space<vmem>>, vector<128x128xbf16>
    %cst = arith.constant dense<0.000000e+00> : vector<128x128xf32>
    %7 = tpu.matmul %5, %6, %cst {dimension_numbers = #tpu.dot_dimension_numbers<[1], [0], [0], [1], [0, 0, 1, 1], [], []>} : vector<128x128xbf16>, vector<128x128xbf16>, vector<128x128xf32> -> vector<128x128xf32>
    %8 = arith.addf %3, %7 : vector<128x128xf32>
    %c0_7 = arith.constant 0 : index
    %c0_8 = arith.constant 0 : index
    %9 = vector.load %arg8[%c0_7, %c0_8] : memref<128x128xf32, #tpu.memory_space<vmem>>, vector<128x128xf32>
    tpu.vector_store %arg8[%c0_7, %c0_8], %8 {strides = array<i32>} : memref<128x128xf32, #tpu.memory_space<vmem>>, vector<128x128xf32>,
    %c0_i32_9 = arith.constant 0 : i32
    %10 = arith.cmpi eq, %arg3, %c0_i32_9 : i32
    %11 = arith.extui %10 : i1 to i32
    %c0_i32_10 = arith.constant 0 : i32
    %12 = arith.cmpi ne, %11, %c0_i32_10 : i32
    scf.if %12 {
      %c0_11 = arith.constant 0 : index
      %c0_12 = arith.constant 0 : index
      %13 = vector.load %arg8[%c0_11, %c0_12] : memref<128x128xf32, #tpu.memory_space<vmem>>, vector<128x128xf32>
      %c0_13 = arith.constant 0 : index
      %c0_14 = arith.constant 0 : index
      %14 = vector.load %arg6[%c0_13, %c0_14] : memref<1x128xf32, #tpu.memory_space<vmem>>, vector<1x128xf32>
      %15 = vector.broadcast %14 : vector<1x128xf32> to vector<128x128xf32>
      %16 = arith.addf %13, %15 : vector<128x128xf32>
      %c0_15 = arith.constant 0 : index
      %c0_16 = arith.constant 0 : index
      %c0_17 = arith.constant 0 : index
      %17 = vector.load %arg7[%c0_15, %c0_16, %c0_17] : memref<1x128x128xf32, #tpu.memory_space<vmem>>, vector<1x128x128xf32>
      %18 = vector.shape_cast %17 : vector<1x128x128xf32> to vector<128x128xf32>
      %19 = vector.shape_cast %16 : vector<128x128xf32> to vector<1x128x128xf32>
      tpu.vector_store %arg7[%c0_15, %c0_16, %c0_17], %19 {strides = array<i32>} : memref<1x128x128xf32, #tpu.memory_space<vmem>>, vector<1x128x128xf32>,
    } else {
    }
    return
  }
  func.func @transform_0(%arg0: i32, %arg1: i32, %arg2: i32, %arg3: i32) -> (i32, i32, i32) {
    %c0_i32 = arith.constant 0 : i32
    return %arg0, %arg1, %arg3 : i32, i32, i32
  }
  func.func @transform_1(%arg0: i32, %arg1: i32, %arg2: i32, %arg3: i32) -> (i32, i32) {
    %c0_i32 = arith.constant 0 : i32
    return %arg3, %arg2 : i32, i32
  }
  func.func @transform_2(%arg0: i32, %arg1: i32, %arg2: i32, %arg3: i32) -> (i32, i32) {
    %c0_i32 = arith.constant 0 : i32
    %c0_i32_0 = arith.constant 0 : i32
    return %c0_i32, %arg2 : i32, i32
  }
  func.func @transform_3(%arg0: i32, %arg1: i32, %arg2: i32, %arg3: i32) -> (i32, i32, i32) {
    %c0_i32 = arith.constant 0 : i32
    return %arg0, %arg1, %arg2 : i32, i32, i32
  }
}

</mosaic_0001>

<llo_original>
// kernel: tpu_custom_call.1
$region0: #{tpu_custom_call.1}
  #allocation0 [shape = 'u32[]', space=smem, size = 0x4, offset = 0x4, fixed_abs, tag = 'smem constant byte address 0x4 - core index']
  #allocation1 [shape = 'u32[144,128]{1,0:T(1,128)}', space=vmem, size = 0x12000, scoped, tag = 'internal scratch']
  #allocation2 [shape = 'f32[128,128]{1,0:T(8,128)}', space=vmem, size = 0x10000, scoped, tag = 'scratch operand']
  %s0 = inlined_call_operand.hbm [shape: bf16[2,256,128], index: 0, kind: input, shape index: {}]
  %s1 = inlined_call_operand.hbm [shape: bf16[128,128], index: 1, kind: input, shape index: {}]
  %s2 = inlined_call_operand.vmem [shape: f32[1,128], index: 2, kind: input, shape index: {}]
  %s3 = inlined_call_operand.hbm [shape: f32[2,256,128], index: 3, kind: output, shape index: {}]
  %s4 = sld [smem:[#allocation0]]
  $region61: #{tpu_custom_call.1} parent=0
    _
  %s6 = ssub.s32 1, %s4
  %s7 = scalar_select 0, %s6, %s4
  $region1: #{tpu_custom_call.1} parent=0
    #allocation3 [shape = 'u8[65536]{0}', space=vmem, size = 0x10000, scoped, tag = 'input window, operand 0']
    #allocation4 [shape = 's32[2]{0}', space=sflag, size = 0x8, scoped, tag = 'scoped memory for tpu_custom_call.1']
    #allocation5 [shape = 's32[2]{0}', space=sflag, size = 0x8, scoped, tag = 'scoped memory for tpu_custom_call.1']
    #allocation6 [shape = 'u8[32768]{0}', space=vmem, size = 0x8000, scoped, tag = 'input window, operand 1, single buffered']
    #allocation7 [shape = 's32[1]{0}', space=sflag, size = 0x4, scoped, tag = 'scoped memory for tpu_custom_call.1']
    #allocation8 [shape = 'u8[131072]{0}', space=vmem, size = 0x20000, scoped, tag = 'output window, operand 0']
    %8 = vsyncpa [#allocation4], 0
    %s9 = scalar_lea.sflag [#allocation4], 1
    %10 = vsyncpa %s9, 0
    %11 = vsyncpa [#allocation7], 0
    %12 = vsyncpa [#allocation5], 0
    %s13 = scalar_lea.sflag [#allocation5], 1
    %14 = vsyncpa %s13, 0
    loop: start=0, step=1, limit=6
    $region2: #{tpu_custom_call.1} parent=1 // loop_pre_header
      _
    $region3: #{tpu_custom_call.1} parent=1 // loop_header
      %s16 = sphi 0, %s20
      %p17 = scmp.ge.s32.totalorder %s16, 6
      %s23 = sphi 0, %s49
      %s24 = sphi 0, %s45
      %s25 = sphi 0, %s41
      %s26 = sphi 0, %s37
      %s27 = sphi 0, %s23
      %s28 = sphi 0, %s24
      %s29 = sphi 0, %s25
      %s30 = sphi 0, %s26
      %s31 = sphi 0, %s27
      %s32 = sphi 0, %s28
      %s33 = sphi 0, %s29
      %s34 = sphi 0, %s30
      %s56 = sphi 0, %s58
      %s59 = sphi 0, %s56
      %s60 = sphi 0, %s59
      %s76 = sphi 0, %s60
      %s84 = sphi 0, %s86
      %s87 = sphi 0, %s84
      %s88 = sphi 0, %s87
      %s104 = sphi 0, %s88
      %s110 = sphi 0, %s112
      %s113 = sphi 0, %s110
      %s114 = sphi 0, %s113
      %s130 = sphi 0, %s114
      %s140 = sphi 0, %s142
      %s143 = sphi 0, %s140
      %s144 = sphi 0, %s143
      %s160 = sphi 0, %s144
    $region4: #{tpu_custom_call.1} parent=1 // loop_header_branch
      %19 = sbr.rel (%p17) target = $region8
    $region5: #{tpu_custom_call.1} parent=1 // loop_body
      %s21 = ssub.s32 %s16, 1
      %s22 = ssub.s32 %s16, 2
      %s35 = sadd.s32 1, %s26
      %p36 = scmp.ge.s32.totalorder %s35, 1
      %s37 = scalar_select %p36, 0, %s35
      %s38 = sadd.s32 1, %s25
      %s39 = scalar_select %p36, %s38, %s25
      %p40 = scmp.ge.s32.totalorder %s39, 1
      %s41 = scalar_select %p40, 0, %s39
      %s42 = sadd.s32 1, %s24
      %s43 = scalar_select %p40, %s42, %s24
      %p44 = scmp.ge.s32.totalorder %s43, 2
      %s45 = scalar_select %p44, 0, %s43
      %s46 = sadd.s32 1, %s23
      %s47 = scalar_select %p44, %s46, %s23
      %p48 = scmp.ge.s32.totalorder %s47, 2
      %s49 = scalar_select %p48, 0, %s47
      %s50 = ssub.s32 %s23, %s49
      %s51 = ssub.s32 %s24, %s45
      %s52 = sor.u32 %s50, %s51
      %s53 = ssub.s32 %s26, %s37
      %s54 = sor.u32 %s52, %s53
      %p55 = scmp.eq.s32.totalorder %s54, 0
      %s57 = sadd.s32 %s56, 1
      %s58 = scalar_select %p55, %s56, %s57
      %p61 = pneg %p55
      %p62 = scmp.eq.s32.totalorder %s16, 3
      %p63 = por %p61, %p62
      %p64 = scmp.ne.s32.totalorder %s56, %s59
      %p65 = scmp.eq.s32.totalorder %s16, 0
      %p66 = por %p64, %p65
      %p67 = scmp.ne.s32.totalorder %s56, %s59
      %p68 = scmp.eq.s32.totalorder %s21, 3
      %p69 = por %p67, %p68
      %p70 = scmp.ne.s32.totalorder %s59, %s60
      %p71 = scmp.eq.s32.totalorder %s21, 0
      %p72 = por %p70, %p71
      %p73 = scmp.ne.s32.totalorder %s59, %s60
      %p74 = scmp.eq.s32.totalorder %s22, 3
      %p75 = por %p73, %p74
      %p77 = scmp.ne.s32.totalorder %s60, %s76
      %p78 = scmp.eq.s32.totalorder %s22, 0
      %p79 = por %p77, %p78
      %s80 = ssub.s32 %s26, %s37
      %s81 = ssub.s32 %s25, %s41
      %s82 = sor.u32 %s80, %s81
      %p83 = scmp.eq.s32.totalorder %s82, 0
      %s85 = sadd.s32 %s84, 1
      %s86 = scalar_select %p83, %s84, %s85
      %p89 = pneg %p83
      %p90 = scmp.eq.s32.totalorder %s16, 3
      %p91 = por %p89, %p90
      %p92 = scmp.ne.s32.totalorder %s84, %s87
      %p93 = scmp.eq.s32.totalorder %s16, 0
      %p94 = por %p92, %p93
      %p95 = scmp.ne.s32.totalorder %s84, %s87
      %p96 = scmp.eq.s32.totalorder %s21, 3
      %p97 = por %p95, %p96
      %p98 = scmp.ne.s32.totalorder %s87, %s88
      %p99 = scmp.eq.s32.totalorder %s21, 0
      %p100 = por %p98, %p99
      %p101 = scmp.ne.s32.totalorder %s87, %s88
      %p102 = scmp.eq.s32.totalorder %s22, 3
      %p103 = por %p101, %p102
      %p105 = scmp.ne.s32.totalorder %s88, %s104
      %p106 = scmp.eq.s32.totalorder %s22, 0
      %p107 = por %p105, %p106
      %s108 = ssub.s32 %s25, %s41
      %p109 = scmp.eq.s32.totalorder %s108, 0
      %s111 = sadd.s32 %s110, 1
      %s112 = scalar_select %p109, %s110, %s111
      %p115 = pneg %p109
      %p116 = scmp.eq.s32.totalorder %s16, 3
      %p117 = por %p115, %p116
      %p118 = scmp.ne.s32.totalorder %s110, %s113
      %p119 = scmp.eq.s32.totalorder %s16, 0
      %p120 = por %p118, %p119
      %p121 = scmp.ne.s32.totalorder %s110, %s113
      %p122 = scmp.eq.s32.totalorder %s21, 3
      %p123 = por %p121, %p122
      %p124 = scmp.ne.s32.totalorder %s113, %s114
      %p125 = scmp.eq.s32.totalorder %s21, 0
      %p126 = por %p124, %p125
      %p127 = scmp.ne.s32.totalorder %s113, %s114
      %p128 = scmp.eq.s32.totalorder %s22, 3
      %p129 = por %p127, %p128
      %p131 = scmp.ne.s32.totalorder %s114, %s130
      %p132 = scmp.eq.s32.totalorder %s22, 0
      %p133 = por %p131, %p132
      %s134 = ssub.s32 %s23, %s49
      %s135 = ssub.s32 %s24, %s45
      %s136 = sor.u32 %s134, %s135
      %s137 = ssub.s32 %s25, %s41
      %s138 = sor.u32 %s136, %s137
      %p139 = scmp.eq.s32.totalorder %s138, 0
      %s141 = sadd.s32 %s140, 1
      %s142 = scalar_select %p139, %s140, %s141
      %p145 = pneg %p139
      %p146 = scmp.eq.s32.totalorder %s16, 3
      %p147 = por %p145, %p146
      %p148 = scmp.ne.s32.totalorder %s140, %s143
      %p149 = scmp.eq.s32.totalorder %s16, 0
      %p150 = por %p148, %p149
      %p151 = scmp.ne.s32.totalorder %s140, %s143
      %p152 = scmp.eq.s32.totalorder %s21, 3
      %p153 = por %p151, %p152
      %p154 = scmp.ne.s32.totalorder %s143, %s144
      %p155 = scmp.eq.s32.totalorder %s21, 0
      %p156 = por %p154, %p155
      %p157 = scmp.ne.s32.totalorder %s143, %s144
      %p158 = scmp.eq.s32.totalorder %s22, 3
      %p159 = por %p157, %p158
      %p161 = scmp.ne.s32.totalorder %s144, %s160
      %p162 = scmp.eq.s32.totalorder %s22, 0
      %p163 = por %p161, %p162
      %p164 = scmp.le.s32.totalorder 1, %s16
      %p165 = scmp.lt.s32.totalorder %s16, 5
      %p166 = pnand %p164, %p165
      %p167 = pneg %p166
      // Predicated region
      $region9: #{tpu_custom_call.1} parent=5 // pred_check
        _
      $region10: #{tpu_custom_call.1} parent=5 // pred_check_branch
        %169 = sbr.rel (%p166) target = $region12
      $region11: #{tpu_custom_call.1} parent=5 // pred_region
        %s170 = ssub.s32 %s16, 1
        // Predicated region
        $region13: #{tpu_custom_call.1} parent=11 // pred_check
          %p171 = pneg %p100
        $region14: #{tpu_custom_call.1} parent=11 // pred_check_branch
          %173 = sbr.rel (%p171) target = $region16
        $region15: #{tpu_custom_call.1} parent=11 // pred_region
          %s174 = smul.u32 16, %s30
          %s176 = ssub.s32 1024, 1024
          %177 = vsyncadd [#allocation7], %s176
          %s178 = sadd.s32 %s29, %s174
          %s179 = smul.addr %s178, 64
          %s180 = scalar_lea.hbm %s1, %s179
          %s181 = sshll.u32 [#allocation6], 4
          %s182 = int_to_ptr.vmem [resolvable:$true] %s181
          %187 = dma.hbm_to_vmem [thread:$0]  %s180, 1024, %s182, [#allocation7], 64, 64, 4
        $region16: #{tpu_custom_call.1} parent=11 // pred_fallthru
          _
        // Predicated region
        $region17: #{tpu_custom_call.1} parent=11 // pred_check
          %p188 = pneg %p126
        $region18: #{tpu_custom_call.1} parent=11 // pred_check_branch
          %190 = sbr.rel (%p188) target = $region20
        $region19: #{tpu_custom_call.1} parent=11 // pred_region
          %p191 = scmp.lt.s32.totalorder %s29, 0
          %s192 = scalar_select %p191, %s29, 0
          %s193 = scalar_lea.vmem %s2, %s192
        $region20: #{tpu_custom_call.1} parent=11 // pred_fallthru
          _
      $region12: #{tpu_custom_call.1} parent=5 // pred_fallthru
        _
      %p194 = scmp.lt.s32.totalorder %s16, 4
      // Predicated region
      $region21: #{tpu_custom_call.1} parent=5 // pred_check
        %p195 = pneg %p194
      $region22: #{tpu_custom_call.1} parent=5 // pred_check_branch
        %197 = sbr.rel (%p195) target = $region24
      $region23: #{tpu_custom_call.1} parent=5 // pred_region
        // Predicated region
        $region25: #{tpu_custom_call.1} parent=23 // pred_check
          %p198 = pneg %p66
        $region26: #{tpu_custom_call.1} parent=23 // pred_check_branch
          %200 = sbr.rel (%p198) target = $region28
        $region27: #{tpu_custom_call.1} parent=23 // pred_region
          %s201 = sand.u32 %s56, 1
          %s202 = scalar_lea.sflag [#allocation4], %s201
          %s203 = sand.u32 %s56, 1
          %s204 = smul.addr %s203, 64
          %s205 = scalar_lea.vmem [#allocation3], %s204
          %s206 = smul.u32 16, %s24
          %s208 = ssub.s32 1024, 1024
          %209 = vsyncadd %s202, %s208
          %s210 = sadd.s32 %s26, %s206
          %s211 = smul.addr %s23, 32
          %s212 = sadd.s32 %s210, %s211
          %s213 = smul.addr %s212, 64
          %s214 = scalar_lea.hbm %s0, %s213
          %s215 = sshll.u32 %s205, 4
          %s216 = int_to_ptr.vmem [resolvable:$true] %s215
          %221 = dma.hbm_to_vmem [thread:$0]  %s214, 1024, %s216, %s202, 64, 64, 4
        $region28: #{tpu_custom_call.1} parent=23 // pred_fallthru
          _
      $region24: #{tpu_custom_call.1} parent=5 // pred_fallthru
        _
      %p222 = scmp.le.s32.totalorder 1, %s16
      %p223 = scmp.lt.s32.totalorder %s16, 5
      %p224 = pnand %p222, %p223
      %p225 = pneg %p224
      // Predicated region
      $region29: #{tpu_custom_call.1} parent=5 // pred_check
        _
      $region30: #{tpu_custom_call.1} parent=5 // pred_check_branch
        %227 = sbr.rel (%p224) target = $region32
      $region31: #{tpu_custom_call.1} parent=5 // pred_region
        %s228 = ssub.s32 %s16, 1
        %s229 = sand.u32 %s59, 1
        %s230 = scalar_lea.sflag [#allocation4], %s229
        %s231 = sand.u32 %s59, 1
        %s232 = smul.addr %s231, 64
        %s233 = scalar_lea.vmem [#allocation3], %s232
        // Predicated region
        $region33: #{tpu_custom_call.1} parent=31 // pred_check
          %p234 = pneg %p72
        $region34: #{tpu_custom_call.1} parent=31 // pred_check_branch
          %236 = sbr.rel (%p234) target = $region36
        $region35: #{tpu_custom_call.1} parent=31 // pred_region
          %237 = dma.done %s230, 1024
        $region36: #{tpu_custom_call.1} parent=31 // pred_fallthru
          _
        // Predicated region
        $region37: #{tpu_custom_call.1} parent=31 // pred_check
          %p238 = pneg %p100
        $region38: #{tpu_custom_call.1} parent=31 // pred_check_branch
          %240 = sbr.rel (%p238) target = $region40
        $region39: #{tpu_custom_call.1} parent=31 // pred_region
          %241 = dma.done [#allocation7], 1024
        $region40: #{tpu_custom_call.1} parent=31 // pred_fallthru
          _
        %s242 = sand.u32 %s59, 1
        %s243 = scalar_lea.sflag [#allocation4], %s242
        %s244 = sand.u32 %s59, 1
        %s245 = smul.addr %s244, 64
        %s246 = scalar_lea.vmem [#allocation3], %s245
        %p247 = pneg %p72
        %p248 = pneg %p69
        %p249 = pneg %p100
        %p250 = pneg %p97
        %p251 = scmp.lt.s32.totalorder %s29, 0
        %s252 = scalar_select %p251, %s29, 0
        %s253 = scalar_lea.vmem %s2, %s252
        %p254 = pneg %p126
        %p255 = pneg %p123
        %p256 = pneg %p156
        %p257 = pneg %p153
        %s258 = sand.u32 %s143, 1
        %s259 = scalar_lea.sflag [#allocation5], %s258
        %s260 = sand.u32 %s143, 1
        %s261 = smul.addr %s260, 128
        %s262 = scalar_lea.vmem [#allocation8], %s261
        %s263 = smul.u32 16, %s28
        %s264 = smul.u32 16, %s30
        %p265 = scmp.lt.s32.totalorder %s29, 0
        %s266 = scalar_select %p265, %s29, 0
        %s267 = scalar_lea.vmem %s2, %s266
        %s268 = smul.u32 16, %s28
        %p270 = scmp.eq.s32.totalorder %s30, 0
        // Predicated region
        $region41: #{tpu_custom_call.1} parent=31 // pred_check
          %p271 = pneg %p270
        $region42: #{tpu_custom_call.1} parent=31 // pred_check_branch
          %273 = sbr.rel (%p271) target = $region44
        $region43: #{tpu_custom_call.1} parent=31 // pred_region
          %274 = vst [vmem:[#allocation2] sm:$0xff] 0.0
          %275 = vst [vmem:[#allocation2 + $0x8] sm:$0xff] 0.0
          %276 = vst [vmem:[#allocation2 + $0x10] sm:$0xff] 0.0
          %277 = vst [vmem:[#allocation2 + $0x18] sm:$0xff] 0.0
          %278 = vst [vmem:[#allocation2 + $0x20] sm:$0xff] 0.0
          %279 = vst [vmem:[#allocation2 + $0x28] sm:$0xff] 0.0
          %280 = vst [vmem:[#allocation2 + $0x30] sm:$0xff] 0.0
          %281 = vst [vmem:[#allocation2 + $0x38] sm:$0xff] 0.0
          %282 = vst [vmem:[#allocation2 + $0x40] sm:$0xff] 0.0
          %283 = vst [vmem:[#allocation2 + $0x48] sm:$0xff] 0.0
          %284 = vst [vmem:[#allocation2 + $0x50] sm:$0xff] 0.0
          %285 = vst [vmem:[#allocation2 + $0x58] sm:$0xff] 0.0
          %286 = vst [vmem:[#allocation2 + $0x60] sm:$0xff] 0.0
          %287 = vst [vmem:[#allocation2 + $0x68] sm:$0xff] 0.0
          %288 = vst [vmem:[#allocation2 + $0x70] sm:$0xff] 0.0
          %289 = vst [vmem:[#allocation2 + $0x78] sm:$0xff] 0.0
        $region44: #{tpu_custom_call.1} parent=31 // pred_fallthru
          _
        %v290 = vld [vmem:[#allocation2] sm:$0xff]
        %v291 = vld [vmem:[#allocation2 + $0x8] sm:$0xff]
        %v292 = vld [vmem:[#allocation2 + $0x10] sm:$0xff]
        %v293 = vld [vmem:[#allocation2 + $0x18] sm:$0xff]
        %v294 = vld [vmem:[#allocation2 + $0x20] sm:$0xff]
        %v295 = vld [vmem:[#allocation2 + $0x28] sm:$0xff]
        %v296 = vld [vmem:[#allocation2 + $0x30] sm:$0xff]
        %v297 = vld [vmem:[#allocation2 + $0x38] sm:$0xff]
        %v298 = vld [vmem:[#allocation2 + $0x40] sm:$0xff]
        %v299 = vld [vmem:[#allocation2 + $0x48] sm:$0xff]
        %v300 = vld [vmem:[#allocation2 + $0x50] sm:$0xff]
        %v301 = vld [vmem:[#allocation2 + $0x58] sm:$0xff]
        %v302 = vld [vmem:[#allocation2 + $0x60] sm:$0xff]
        %v303 = vld [vmem:[#allocation2 + $0x68] sm:$0xff]
        %v304 = vld [vmem:[#allocation2 + $0x70] sm:$0xff]
        %v305 = vld [vmem:[#allocation2 + $0x78] sm:$0xff]
        %v306 = vld [vmem:[%s233] sm:$0xf]
        %v307 = vld [vmem:[%s233 + $0x4] sm:$0xf]
        %v308 = vld [vmem:[%s233 + $0x8] sm:$0xf]
        %v309 = vld [vmem:[%s233 + $0xc] sm:$0xf]
        %v310 = vld [vmem:[%s233 + $0x10] sm:$0xf]
        %v311 = vld [vmem:[%s233 + $0x14] sm:$0xf]
        %v312 = vld [vmem:[%s233 + $0x18] sm:$0xf]
        %v313 = vld [vmem:[%s233 + $0x1c] sm:$0xf]
        %v314 = vld [vmem:[%s233 + $0x20] sm:$0xf]
        %v315 = vld [vmem:[%s233 + $0x24] sm:$0xf]
        %v316 = vld [vmem:[%s233 + $0x28] sm:$0xf]
        %v317 = vld [vmem:[%s233 + $0x2c] sm:$0xf]
        %v318 = vld [vmem:[%s233 + $0x30] sm:$0xf]
        %v319 = vld [vmem:[%s233 + $0x34] sm:$0xf]
        %v320 = vld [vmem:[%s233 + $0x38] sm:$0xf]
        %v321 = vld [vmem:[%s233 + $0x3c] sm:$0xf]
        %v322 = vld [vmem:[#allocation6] sm:$0xf]
        %v323 = vld [vmem:[#allocation6 + $0x4] sm:$0xf]
        %v324 = vld [vmem:[#allocation6 + $0x8] sm:$0xf]
        %v325 = vld [vmem:[#allocation6 + $0xc] sm:$0xf]
        %v326 = vld [vmem:[#allocation6 + $0x10] sm:$0xf]
        %v327 = vld [vmem:[#allocation6 + $0x14] sm:$0xf]
        %v328 = vld [vmem:[#allocation6 + $0x18] sm:$0xf]
        %v329 = vld [vmem:[#allocation6 + $0x1c] sm:$0xf]
        %v330 = vld [vmem:[#allocation6 + $0x20] sm:$0xf]
        %v331 = vld [vmem:[#allocation6 + $0x24] sm:$0xf]
        %v332 = vld [vmem:[#allocation6 + $0x28] sm:$0xf]
        %v333 = vld [vmem:[#allocation6 + $0x2c] sm:$0xf]
        %v334 = vld [vmem:[#allocation6 + $0x30] sm:$0xf]
        %v335 = vld [vmem:[#allocation6 + $0x34] sm:$0xf]
        %v336 = vld [vmem:[#allocation6 + $0x38] sm:$0xf]
        %v337 = vld [vmem:[#allocation6 + $0x3c] sm:$0xf]
        %v354 = vunpack.c.l.b16 %v306
        %v355 = vunpack.c.l.b16 %v307
        %v356 = vunpack.c.l.b16 %v308
        %v357 = vunpack.c.l.b16 %v309
        %v358 = vunpack.c.l.b16 %v310
        %v359 = vunpack.c.l.b16 %v311
        %v360 = vunpack.c.l.b16 %v312
        %v361 = vunpack.c.l.b16 %v313
        %v362 = vunpack.c.l.b16 %v314
        %v363 = vunpack.c.l.b16 %v315
        %v364 = vunpack.c.l.b16 %v316
        %v365 = vunpack.c.l.b16 %v317
        %v366 = vunpack.c.l.b16 %v318
        %v367 = vunpack.c.l.b16 %v319
        %v368 = vunpack.c.l.b16 %v320
        %v369 = vunpack.c.l.b16 %v321
        %v370 = vpack.c.b16 %v355, %v354
        %v371 = vpack.c.b16 %v357, %v356
        %v372 = vpack.c.b16 %v359, %v358
        %v373 = vpack.c.b16 %v361, %v360
        %v374 = vpack.c.b16 %v363, %v362
        %v375 = vpack.c.b16 %v365, %v364
        %v376 = vpack.c.b16 %v367, %v366
        %v377 = vpack.c.b16 %v369, %v368
        %v402 = vunpack.c.l.b16 %v322
        %v403 = vunpack.c.l.b16 %v323
        %v404 = vunpack.c.l.b16 %v324
        %v405 = vunpack.c.l.b16 %v325
        %v406 = vunpack.c.l.b16 %v326
        %v407 = vunpack.c.l.b16 %v327
        %v408 = vunpack.c.l.b16 %v328
        %v409 = vunpack.c.l.b16 %v329
        %v410 = vunpack.c.l.b16 %v330
        %v411 = vunpack.c.l.b16 %v331
        %v412 = vunpack.c.l.b16 %v332
        %v413 = vunpack.c.l.b16 %v333
        %v414 = vunpack.c.l.b16 %v334
        %v415 = vunpack.c.l.b16 %v335
        %v416 = vunpack.c.l.b16 %v336
        %v417 = vunpack.c.l.b16 %v337
        %v418 = vpack.c.b16 %v403, %v402
        %v419 = vpack.c.b16 %v405, %v404
        %v420 = vpack.c.b16 %v407, %v406
        %v421 = vpack.c.b16 %v409, %v408
        %v422 = vpack.c.b16 %v411, %v410
        %v423 = vpack.c.b16 %v413, %v412
        %v424 = vpack.c.b16 %v415, %v414
        %v425 = vpack.c.b16 %v417, %v416
        %434 = vmatprep.subr.bf16.mxu0 0
        %435 = vmatpush1.bf16.msra.mxu0 %v418
        %436 = vmatprep.subr.bf16.mxu0 0
        %437 = vmatpush1.bf16.msra.mxu0 %v419
        %438 = vmatprep.subr.bf16.mxu0 0
        %439 = vmatpush1.bf16.msra.mxu0 %v420
        %440 = vmatprep.subr.bf16.mxu0 0
        %441 = vmatpush1.bf16.msra.mxu0 %v421
        %442 = vmatprep.subr.bf16.mxu0 0
        %443 = vmatpush1.bf16.msra.mxu0 %v422
        %444 = vmatprep.subr.bf16.mxu0 0
        %445 = vmatpush1.bf16.msra.mxu0 %v423
        %446 = vmatprep.subr.bf16.mxu0 0
        %447 = vmatpush1.bf16.msra.mxu0 %v424
        %448 = vmatprep.subr.bf16.mxu0 0
        %449 = vmatpush1.bf16.msra.mxu0 %v425
        %450 = vmatprep.subr.bf16.mxu0 0
        %451 = vmatpush1.bf16.msra.mxu0 0
        %452 = vmatprep.subr.bf16.mxu0 0
        %453 = vmatpush1.bf16.msra.mxu0 0
        %454 = vmatprep.subr.bf16.mxu0 0
        %455 = vmatpush1.bf16.msra.mxu0 0
        %456 = vmatprep.subr.bf16.mxu0 0
        %457 = vmatpush1.bf16.msra.mxu0 0
        %458 = vmatprep.subr.bf16.mxu0 0
        %459 = vmatpush1.bf16.msra.mxu0 0
        %460 = vmatprep.subr.bf16.mxu0 0
        %461 = vmatpush1.bf16.msra.mxu0 0
        %462 = vmatprep.subr.bf16.mxu0 0
        %463 = vmatpush1.bf16.msra.mxu0 0
        %464 = vmatprep.subr.bf16.mxu0 0
        %465 = vmatpush1.bf16.msra.mxu0 0
        %466 = vmatprep.mubr.bf16.mxu0 0
        %467 = vmatmul.mubr.bf16.gmra.mrb[0].mxu0 %v370
        %v468 = vpop.f32.mrb[0].mxu0
        %v469 = vadd.f32 0.0, %v468
        %v470 = vpop.f32.mrb[0].mxu0
        %v471 = vpop.f32.mrb[0].mxu0
        %v472 = vadd.f32 0.0, %v471
        %v473 = vpop.f32.mrb[0].mxu0
        %474 = vmatprep.mubr.bf16.mxu0 0
        %475 = vmatmul.mubr.bf16.gmra.mrb[0].mxu0 %v371
        %v476 = vpop.f32.mrb[0].mxu0
        %v477 = vadd.f32 0.0, %v476
        %v478 = vpop.f32.mrb[0].mxu0
        %v479 = vpop.f32.mrb[0].mxu0
        %v480 = vadd.f32 0.0, %v479
        %v481 = vpop.f32.mrb[0].mxu0
        %482 = vmatprep.mubr.bf16.mxu0 0
        %483 = vmatmul.mubr.bf16.gmra.mrb[0].mxu0 %v372
        %v484 = vpop.f32.mrb[0].mxu0
        %v485 = vadd.f32 0.0, %v484
        %v486 = vpop.f32.mrb[0].mxu0
        %v487 = vpop.f32.mrb[0].mxu0
        %v488 = vadd.f32 0.0, %v487
        %v489 = vpop.f32.mrb[0].mxu0
        %490 = vmatprep.mubr.bf16.mxu0 0
        %491 = vmatmul.mubr.bf16.gmra.mrb[0].mxu0 %v373
        %v492 = vpop.f32.mrb[0].mxu0
        %v493 = vadd.f32 0.0, %v492
        %v494 = vpop.f32.mrb[0].mxu0
        %v495 = vpop.f32.mrb[0].mxu0
        %v496 = vadd.f32 0.0, %v495
        %v497 = vpop.f32.mrb[0].mxu0
        %498 = vmatprep.mubr.bf16.mxu0 0
        %499 = vmatmul.mubr.bf16.gmra.mrb[0].mxu0 %v374
        %v500 = vpop.f32.mrb[0].mxu0
        %v501 = vadd.f32 0.0, %v500
        %v502 = vpop.f32.mrb[0].mxu0
        %v503 = vpop.f32.mrb[0].mxu0
        %v504 = vadd.f32 0.0, %v503
        %v505 = vpop.f32.mrb[0].mxu0
        %506 = vmatprep.mubr.bf16.mxu0 0
        %507 = vmatmul.mubr.bf16.gmra.mrb[0].mxu0 %v375
        %v508 = vpop.f32.mrb[0].mxu0
        %v509 = vadd.f32 0.0, %v508
        %v510 = vpop.f32.mrb[0].mxu0
        %v511 = vpop.f32.mrb[0].mxu0
        %v512 = vadd.f32 0.0, %v511
        %v513 = vpop.f32.mrb[0].mxu0
        %514 = vmatprep.mubr.bf16.mxu0 0
        %515 = vmatmul.mubr.bf16.gmra.mrb[0].mxu0 %v376
        %v516 = vpop.f32.mrb[0].mxu0
        %v517 = vadd.f32 0.0, %v516
        %v518 = vpop.f32.mrb[0].mxu0
        %v519 = vpop.f32.mrb[0].mxu0
        %v520 = vadd.f32 0.0, %v519
        %v521 = vpop.f32.mrb[0].mxu0
        %522 = vmatprep.mubr.bf16.mxu0 0
        %523 = vmatmul.mubr.bf16.gmra.mrb[0].mxu0 %v377
        %v524 = vpop.f32.mrb[0].mxu0
        %v525 = vadd.f32 0.0, %v524
        %v526 = vpop.f32.mrb[0].mxu0
        %v527 = vpop.f32.mrb[0].mxu0
        %v528 = vadd.f32 0.0, %v527
        %v529 = vpop.f32.mrb[0].mxu0
        %530 = vdwg.mxu0
        %v531 = vadd.f32 %v290, %v469
        %v532 = vadd.f32 %v291, %v472
        %v533 = vadd.f32 %v292, %v477
        %v534 = vadd.f32 %v293, %v480
        %v535 = vadd.f32 %v294, %v485
        %v536 = vadd.f32 %v295, %v488
        %v537 = vadd.f32 %v296, %v493
        %v538 = vadd.f32 %v297, %v496
        %v539 = vadd.f32 %v298, %v501
        %v540 = vadd.f32 %v299, %v504
        %v541 = vadd.f32 %v300, %v509
        %v542 = vadd.f32 %v301, %v512
        %v543 = vadd.f32 %v302, %v517
        %v544 = vadd.f32 %v303, %v520
        %v545 = vadd.f32 %v304, %v525
        %v546 = vadd.f32 %v305, %v528
        %547 = vst [vmem:[#allocation2] sm:$0xff] %v531
        %548 = vst [vmem:[#allocation2 + $0x8] sm:$0xff] %v532
        %549 = vst [vmem:[#allocation2 + $0x10] sm:$0xff] %v533
        %550 = vst [vmem:[#allocation2 + $0x18] sm:$0xff] %v534
        %551 = vst [vmem:[#allocation2 + $0x20] sm:$0xff] %v535
        %552 = vst [vmem:[#allocation2 + $0x28] sm:$0xff] %v536
        %553 = vst [vmem:[#allocation2 + $0x30] sm:$0xff] %v537
        %554 = vst [vmem:[#allocation2 + $0x38] sm:$0xff] %v538
        %555 = vst [vmem:[#allocation2 + $0x40] sm:$0xff] %v539
        %556 = vst [vmem:[#allocation2 + $0x48] sm:$0xff] %v540
        %557 = vst [vmem:[#allocation2 + $0x50] sm:$0xff] %v541
        %558 = vst [vmem:[#allocation2 + $0x58] sm:$0xff] %v542
        %559 = vst [vmem:[#allocation2 + $0x60] sm:$0xff] %v543
        %560 = vst [vmem:[#allocation2 + $0x68] sm:$0xff] %v544
        %561 = vst [vmem:[#allocation2 + $0x70] sm:$0xff] %v545
        %562 = vst [vmem:[#allocation2 + $0x78] sm:$0xff] %v546
        // Predicated region
        $region45: #{tpu_custom_call.1} parent=31 // pred_check
          %p563 = pneg %p270
        $region46: #{tpu_custom_call.1} parent=31 // pred_check_branch
          %565 = sbr.rel (%p563) target = $region48
        $region47: #{tpu_custom_call.1} parent=31 // pred_region
          %v566 = vld [vmem:[#allocation2] sm:$0xff]
          %v567 = vld [vmem:[#allocation2 + $0x8] sm:$0xff]
          %v568 = vld [vmem:[#allocation2 + $0x10] sm:$0xff]
          %v569 = vld [vmem:[#allocation2 + $0x18] sm:$0xff]
          %v570 = vld [vmem:[#allocation2 + $0x20] sm:$0xff]
          %v571 = vld [vmem:[#allocation2 + $0x28] sm:$0xff]
          %v572 = vld [vmem:[#allocation2 + $0x30] sm:$0xff]
          %v573 = vld [vmem:[#allocation2 + $0x38] sm:$0xff]
          %v574 = vld [vmem:[#allocation2 + $0x40] sm:$0xff]
          %v575 = vld [vmem:[#allocation2 + $0x48] sm:$0xff]
          %v576 = vld [vmem:[#allocation2 + $0x50] sm:$0xff]
          %v577 = vld [vmem:[#allocation2 + $0x58] sm:$0xff]
          %v578 = vld [vmem:[#allocation2 + $0x60] sm:$0xff]
          %v579 = vld [vmem:[#allocation2 + $0x68] sm:$0xff]
          %v580 = vld [vmem:[#allocation2 + $0x70] sm:$0xff]
          %v581 = vld [vmem:[#allocation2 + $0x78] sm:$0xff]
          %v582 = vld [vmem:[%s267] sm:$0x1]
          %v584 = vlaneseq
          %v585 = vshrl.u32 %v584, 7
          %v586 = vsub.s32 0, %v585
          %v587 = vrot.slane %v582, %v586
          %v589 = vadd.f32 %v566, %v587
          %v590 = vadd.f32 %v567, %v587
          %v591 = vadd.f32 %v568, %v587
          %v592 = vadd.f32 %v569, %v587
          %v593 = vadd.f32 %v570, %v587
          %v594 = vadd.f32 %v571, %v587
          %v595 = vadd.f32 %v572, %v587
          %v596 = vadd.f32 %v573, %v587
          %v597 = vadd.f32 %v574, %v587
          %v598 = vadd.f32 %v575, %v587
          %v599 = vadd.f32 %v576, %v587
          %v600 = vadd.f32 %v577, %v587
          %v601 = vadd.f32 %v578, %v587
          %v602 = vadd.f32 %v579, %v587
          %v603 = vadd.f32 %v580, %v587
          %v604 = vadd.f32 %v581, %v587
          %605 = vst [vmem:[%s262] sm:$0xff] %v589
          %606 = vst [vmem:[%s262 + $0x8] sm:$0xff] %v590
          %607 = vst [vmem:[%s262 + $0x10] sm:$0xff] %v591
          %608 = vst [vmem:[%s262 + $0x18] sm:$0xff] %v592
          %609 = vst [vmem:[%s262 + $0x20] sm:$0xff] %v593
          %610 = vst [vmem:[%s262 + $0x28] sm:$0xff] %v594
          %611 = vst [vmem:[%s262 + $0x30] sm:$0xff] %v595
          %612 = vst [vmem:[%s262 + $0x38] sm:$0xff] %v596
          %613 = vst [vmem:[%s262 + $0x40] sm:$0xff] %v597
          %614 = vst [vmem:[%s262 + $0x48] sm:$0xff] %v598
          %615 = vst [vmem:[%s262 + $0x50] sm:$0xff] %v599
          %616 = vst [vmem:[%s262 + $0x58] sm:$0xff] %v600
          %617 = vst [vmem:[%s262 + $0x60] sm:$0xff] %v601
          %618 = vst [vmem:[%s262 + $0x68] sm:$0xff] %v602
          %619 = vst [vmem:[%s262 + $0x70] sm:$0xff] %v603
          %620 = vst [vmem:[%s262 + $0x78] sm:$0xff] %v604
        $region48: #{tpu_custom_call.1} parent=31 // pred_fallthru
          _
        %s621 = sand.u32 %s143, 1
        %s622 = scalar_lea.sflag [#allocation5], %s621
        %s623 = sand.u32 %s143, 1
        %s624 = smul.addr %s623, 128
        %s625 = scalar_lea.vmem [#allocation8], %s624
        // Predicated region
        $region49: #{tpu_custom_call.1} parent=31 // pred_check
          %p626 = pneg %p153
        $region50: #{tpu_custom_call.1} parent=31 // pred_check_branch
          %628 = sbr.rel (%p626) target = $region52
        $region51: #{tpu_custom_call.1} parent=31 // pred_region
          %s629 = smul.u32 16, %s28
          %s631 = ssub.s32 2048, 2048
          %632 = vsyncadd %s622, %s631
          %s633 = sadd.s32 %s29, %s629
          %s634 = smul.addr %s27, 32
          %s635 = sadd.s32 %s633, %s634
          %s636 = smul.addr %s635, 128
          %s637 = scalar_lea.hbm %s3, %s636
          %s638 = sshll.u32 %s625, 4
          %s639 = int_to_ptr.vmem [resolvable:$true] %s638
          %644 = dma.vmem_to_hbm [thread:$0]  %s639, 2048, %s637, %s622, 128, 128, 8
        $region52: #{tpu_custom_call.1} parent=31 // pred_fallthru
          _
      $region32: #{tpu_custom_call.1} parent=5 // pred_fallthru
        _
      %p645 = scmp.le.s32.totalorder 2, %s16
      // Predicated region
      $region53: #{tpu_custom_call.1} parent=5 // pred_check
        %p646 = pneg %p645
      $region54: #{tpu_custom_call.1} parent=5 // pred_check_branch
        %648 = sbr.rel (%p646) target = $region56
      $region55: #{tpu_custom_call.1} parent=5 // pred_region
        %s649 = ssub.s32 %s16, 2
        // Predicated region
        $region57: #{tpu_custom_call.1} parent=55 // pred_check
          %p650 = pneg %p159
        $region58: #{tpu_custom_call.1} parent=55 // pred_check_branch
          %652 = sbr.rel (%p650) target = $region60
        $region59: #{tpu_custom_call.1} parent=55 // pred_region
          %s653 = sand.u32 %s144, 1
          %s654 = scalar_lea.sflag [#allocation5], %s653
          %s655 = sand.u32 %s144, 1
          %s656 = smul.addr %s655, 128
          %s657 = scalar_lea.vmem [#allocation8], %s656
          %658 = dma.done %s654, 2048
        $region60: #{tpu_custom_call.1} parent=55 // pred_fallthru
          _
      $region56: #{tpu_custom_call.1} parent=5 // pred_fallthru
        _
    $region6: #{tpu_custom_call.1} parent=1 // loop_footer
      %s20 = sadd.s32 1, %s16
    $region7: #{tpu_custom_call.1} parent=1 // loop_footer_branch
      %15 = sbr.rel target = $region3
    $region8: #{tpu_custom_call.1} parent=1 // loop_exit
      _
    %659 = vsyncpa [#allocation4], 1
    %s660 = scalar_lea.sflag [#allocation4], 1
    %661 = vsyncpa %s660, 1
    %662 = vsyncpa [#allocation7], 1
    %663 = vsyncpa [#allocation5], 1
    %s664 = scalar_lea.sflag [#allocation5], 1
    %665 = vsyncpa %s664, 1

</llo_original>
